<compile_context>
chip_gen: v5e
topology: v5e:2x2
jax: 0.10.0
libtpu: 0.0.40
codegen_flags: <defaults>
</compile_context>

<pallas_src>
import functools

import numpy as np
import jax
import jax.numpy as jnp
from jax import lax
from jax.experimental import pallas as pl
from jax.experimental.pallas import tpu as pltpu


# ---------------------------------------------------------------------------
# Pallas kernel: masked longitudinal-MSE partial sums.
#
#   lp_ref : (block_b, S*F)     long_pred rows (batch on sublanes)
#   d_ref  : (block_b, S*(F+1)) raw data rows (aux column kept, masked here)
#   out_ref: (1, 8, 128)        sublane 0 = sum of squared errors,
#                               sublane 1 = number of (visit, feature) pairs
# ---------------------------------------------------------------------------
def _long_mse_kernel(lp_ref, d_ref, out_ref, *, seq_len, num_feat, num_var,
                     batch, block_b):
    bb = lp_ref.shape[0]
    Ld = d_ref.shape[1]                      # seq_len * num_var
    pid = pl.program_id(0)

    # Rows of this block that are real batch entries (last block may be ragged
    # since the wrapper no longer pads the batch).
    row = lax.broadcasted_iota(jnp.int32, (bb, 1), 0) + pid * block_b
    valid = row < batch                                              # (bb, 1)

    lp = lp_ref[...].astype(jnp.float32)                             # (bb, S*F)
    d = d_ref[...].astype(jnp.float32)                               # (bb, S*V)

    # Number of observed visits per row from the NaN pattern of the first
    # observed variable: data[:, :, 1]  <->  lanes with lane % num_var == 1.
    lane = lax.broadcasted_iota(jnp.int32, (1, Ld), 1)
    feat0 = (lane % num_var) == 1                                    # (1, Ld)
    notnan = d == d                                                  # (bb, Ld)
    nvisits = jnp.sum(jnp.where(jnp.logical_and(feat0, notnan), 1.0, 0.0),
                      axis=1, keepdims=True)                         # (bb, 1)

    # TODO(synk): relies on the contiguous-prefix observation pattern the
    #             reference implicitly assumes (NaN padding only after the
    #             last observed visit).
    # Pair long_pred[b, s, :] with data[b, s + 1, 1:] for s < nvisits - 1.
    # The per-visit strides differ (F for long_pred, F+1 for raw data), so the
    # pairing is done with a small static lane-slice loop over visits; all
    # masked lanes (NaN-padded visits, ragged rows) are where()-ed to zero so
    # NaNs never reach the accumulator.
    acc = jnp.zeros((bb, num_feat), dtype=jnp.float32)
    for s in range(seq_len - 1):
        lp_s = lp[:, s * num_feat:(s + 1) * num_feat]                # lp[b, s, :]
        x_s1 = d[:, (s + 1) * num_var + 1:(s + 2) * num_var]         # x[b, s+1, :]
        m = jnp.logical_and(valid, nvisits > (s + 1))                # s < nvisits-1
        diff = lp_s - x_s1
        acc = acc + jnp.where(m, diff * diff, 0.0)
    sq_sum = jnp.sum(acc)

    # Pair count computed analytically from nvisits (no full-width reduce).
    pairs = jnp.where(valid, jnp.maximum(nvisits - 1.0, 0.0), 0.0)
    cnt_sum = jnp.float32(num_feat) * jnp.sum(pairs)

    # Single unmasked (8,128)-aligned store of the per-block partials.
    sub = lax.broadcasted_iota(jnp.int32, out_ref.shape, 1)
    out_ref[...] = jnp.where(sub == 0, sq_sum,
                             jnp.where(sub == 1, cnt_sum, 0.0)).astype(jnp.float32)


def _choose_block_b(batch, row_bytes):
    # ~4 MiB of long_pred + data rows per grid step; double-buffered by the
    # BlockSpec pipeline this is ~8-10 MiB resident — inside v7x's 64 MiB/TC
    # VMEM and (with the explicit vmem_limit_bytes below) v5e/v6e scoped VMEM.
    bb = (4 << 20) // max(row_bytes, 1)
    bb = max(8, (bb // 8) * 8)
    # Keep >= ~8 grid blocks when the batch allows it so ("parallel",) grid
    # semantics can spread blocks over v7x's two TensorCores and the DMA
    # pipeline stays busy.  min() only ever shrinks the tile, so huge batches
    # still get the full byte-target tile.
    cap = max(8, ((pl.cdiv(batch, 8) + 7) // 8) * 8)
    bb = min(bb, cap)
    if bb >= batch:
        return batch   # tiny batch: one full block (block == full dim is legal)
    return bb


def _longitudinal_mse_pallas(long_pred, data):
    """Masked longitudinal MSE: mean over (lp[b,s,:] - data[b,s+1,1:])^2."""
    B, S, F = long_pred.shape
    V = data.shape[-1]
    if V != F + 1:
        raise ValueError("data last dim must be long_pred last dim + 1")

    # Free (contiguous) reshapes — no extra HBM pass, the aux column of `data`
    # is masked inside the kernel instead of being sliced out in the wrapper.
    lp_flat = long_pred.reshape(B, S * F)
    d_flat = data.reshape(B, S * V)

    row_bytes = (lp_flat.shape[1] * lp_flat.dtype.itemsize +
                 d_flat.shape[1] * d_flat.dtype.itemsize)
    block_b = _choose_block_b(B, row_bytes)
    num_blocks = pl.cdiv(B, block_b)

    kernel = functools.partial(_long_mse_kernel, seq_len=S, num_feat=F,
                               num_var=V, batch=B, block_b=block_b)

    parts = pl.pallas_call(
        kernel,
        out_shape=jax.ShapeDtypeStruct((num_blocks, 8, 128), jnp.float32),
        grid=(num_blocks,),
        in_specs=[
            pl.BlockSpec((block_b, S * F), lambda i: (i, 0)),
            pl.BlockSpec((block_b, S * V), lambda i: (i, 0)),
        ],
        out_specs=pl.BlockSpec((1, 8, 128), lambda i: (i, 0, 0)),
        compiler_params=pltpu.CompilerParams(
            dimension_semantics=("parallel",),
            # v5e's default scoped VMEM is only 16 MiB; raise it explicitly.
            # Actual double-buffered working set stays ~8-10 MiB, well under
            # v7x's 64 MiB-per-TensorCore physical VMEM.
            vmem_limit_bytes=64 * 1024 * 1024),
    )(lp_flat, d_flat)

    sq_total = jnp.sum(parts[:, 0, 0])
    cnt_total = jnp.sum(parts[:, 1, 0])
    # NOTE: 0/0 = NaN when no patient has >= 2 observed visits, matching the
    # reference's empty-mean behaviour.
    return sq_total / cnt_total


def _negative_log_likelihood_xla(surv_pred, event, event_time, time_range):
    """Survival NLL in plain XLA (touches only B*T + 2B elements — per the
    perf review this tiny term does not belong in the HBM-bound kernel)."""
    n, T = surv_pred.shape
    idx = jnp.searchsorted(time_range, event_time, side='right') - 1   # (B,)
    col = jnp.arange(T, dtype=jnp.int32)[None, :]
    # event == 1 : f = pred[i, idx]  (idx == -1 wraps to the last bin, like
    # torch negative indexing)
    idx_ev = jnp.where(idx < 0, idx + T, idx)
    f_event = jnp.sum(jnp.where(col == idx_ev[:, None], surv_pred, 0.0), axis=1)
    # event == 0 : f = sum(pred[i, idx + 1:])
    f_cens = jnp.sum(jnp.where(col > idx[:, None], surv_pred, 0.0), axis=1)
    f = jnp.where(event > 0.5, f_event, f_cens)
    f = jnp.where(f == 0.0, jnp.float32(1e-8), f)
    return -jnp.sum(jnp.log(f)) / jnp.float32(n)


class TotalLoss:
    """JAX/Pallas port of the PyTorch TotalLoss module (forward pass)."""

    def __init__(self, time_range, surv_val, long_val, rank_val=0):
        self.time_range = jnp.asarray(time_range, dtype=jnp.float32)
        self.surv_val = surv_val
        self.long_val = long_val

    def __call__(self, long_pred, surv_pred, data, labels):
        long_pred = jnp.asarray(long_pred)
        surv_pred = jnp.asarray(surv_pred, jnp.float32)
        data = jnp.asarray(data)

        if self.surv_val == 0:
            nll = jnp.float32(0.0)
        else:
            event = jnp.asarray(labels['event'], jnp.float32).reshape(-1)
            event_time = jnp.asarray(labels['event_time'], jnp.float32).reshape(-1)
            nll = _negative_log_likelihood_xla(surv_pred, event, event_time,
                                               self.time_range)

        if self.long_val == 0:
            ll = jnp.float32(0.0)
        else:
            ll = _longitudinal_mse_pallas(long_pred, data)

        return self.surv_val * nll + self.long_val * ll


# ------------------------- numpy reference (torch port) ----------------------
def _ref_longitudinal(long_pred, data):
    x = data[:, :, 1:]
    hist = ~np.isnan(x[:, :, 0])
    idx_last = hist.sum(axis=1) - 1
    hist[np.arange(x.shape[0]), idx_last] = False
    future = np.concatenate(
        [np.zeros((x.shape[0], 1), dtype=bool), hist[:, :-1]], axis=1)
    return float(np.mean((long_pred[hist] - x[future]) ** 2))


def _ref_nll(pred, event, event_time_idx):
    n = len(event)
    f = np.zeros(n, dtype=np.float64)
    for i in range(n):
        if event[i] == 1:
            f[i] = pred[i, event_time_idx[i]]
        else:
            f[i] = pred[i, event_time_idx[i] + 1:].sum()
    f[f == 0] = 1e-8
    return float(-np.sum(np.log(f)) / n)


if __name__ == "__main__":
    B, S, V = 2, 8, 4           # batch, seq_len, num_var (F = V - 1 = 3)
    F = V - 1
    T = 10                      # len(time_range)
    surv_val, long_val = 0.7, 0.3

    key = jax.random.PRNGKey(0)
    k1, k2, k3 = jax.random.split(key, 3)

    data = jax.random.normal(k1, (B, S, V), dtype=jnp.float32)
    # patient 0 has 6 observed visits (NaN padding after), patient 1 has all 8
    data = data.at[0, 6:, :].set(jnp.nan)
    long_pred = jax.random.normal(k2, (B, S, F), dtype=jnp.float32)

    time_range = jnp.arange(T, dtype=jnp.float32)
    surv_pred = jax.nn.softmax(jax.random.normal(k3, (B, T), dtype=jnp.float32), axis=1)
    labels = {
        'event': np.array([1.0, 0.0], dtype=np.float32),
        'event_time': np.array([3.5, 9.0], dtype=np.float32),
    }

    loss_fn = TotalLoss(time_range, surv_val, long_val)
    total = loss_fn(long_pred, surv_pred, data, labels)
    total = jax.block_until_ready(total)

    # reference (direct port of the PyTorch forward)
    np_idx = np.searchsorted(np.asarray(time_range), labels['event_time'],
                             side='right') - 1
    ref_nll = _ref_nll(np.asarray(surv_pred), labels['event'], np_idx)
    ref_mse = _ref_longitudinal(np.asarray(long_pred), np.asarray(data))
    ref_total = surv_val * ref_nll + long_val * ref_mse

    np.testing.assert_allclose(np.asarray(total), ref_total, rtol=1e-5, atol=1e-6)
    print("KERNEL_OK")
</pallas_src>

<mosaic_0001>
module attributes {stable_mosaic.version = 11 : i64} {
  func.func @_long_mse_kernel(%arg0: i32, %arg1: memref<2x24xf32, #tpu.memory_space<vmem>>, %arg2: memref<2x32xf32, #tpu.memory_space<vmem>>, %arg3: memref<1x8x128xf32, #tpu.memory_space<vmem>>) attributes {dimension_semantics = [#tpu.dimension_semantics<parallel>], iteration_bounds = array<i64: 1>, scalar_prefetch = 0 : i64, scratch_operands = 0 : i64, tpu.core_type = #tpu.core_type<tc>, window_params = [{transform_indices = @transform_0, window_bounds = array<i64: 2, 24>}, {transform_indices = @transform_1, window_bounds = array<i64: 2, 32>}, {transform_indices = @transform_2, window_bounds = array<i64: 1, 8, 128>}]} {
    %0 = tpu.iota {dimensions = array<i32: 0>} : vector<2x1xi32>
    %c2_i32 = arith.constant 2 : i32
    %1 = arith.muli %arg0, %c2_i32 : i32
    %2 = vector.broadcast %1 : i32 to vector<2x1xi32>
    %3 = arith.addi %0, %2 : vector<2x1xi32>
    %c2_i32_0 = arith.constant 2 : i32
    %4 = vector.broadcast %c2_i32_0 : i32 to vector<2x1xi32>
    %5 = arith.cmpi slt, %3, %4 : vector<2x1xi32>
    %c0 = arith.constant 0 : index
    %c0_1 = arith.constant 0 : index
    %6 = vector.load %arg1[%c0, %c0_1] : memref<2x24xf32, #tpu.memory_space<vmem>>, vector<2x24xf32>
    %c0_2 = arith.constant 0 : index
    %c0_3 = arith.constant 0 : index
    %7 = vector.load %arg2[%c0_2, %c0_3] : memref<2x32xf32, #tpu.memory_space<vmem>>, vector<2x32xf32>
    %8 = tpu.iota {dimensions = array<i32: 1>} : vector<1x32xi32>
    %c4_i32 = arith.constant 4 : i32
    %c0_i32 = arith.constant 0 : i32
    %9 = arith.cmpi eq, %c4_i32, %c0_i32 : i32
    %c1_i32 = arith.constant 1 : i32
    %10 = arith.select %9, %c1_i32, %c4_i32 : i32
    %11 = vector.broadcast %10 : i32 to vector<1x32xi32>
    %12 = arith.remsi %8, %11 : vector<1x32xi32>
    %c0_i32_4 = arith.constant 0 : i32
    %13 = vector.broadcast %c0_i32_4 : i32 to vector<1x32xi32>
    %14 = arith.cmpi ne, %12, %13 : vector<1x32xi32>
    %c0_i32_5 = arith.constant 0 : i32
    %15 = vector.broadcast %c0_i32_5 : i32 to vector<1x32xi32>
    %16 = arith.cmpi slt, %12, %15 : vector<1x32xi32>
    %c0_i32_6 = arith.constant 0 : i32
    %17 = arith.cmpi slt, %10, %c0_i32_6 : i32
    %18 = vector.broadcast %17 : i1 to vector<1x32xi1>
    %19 = vector.broadcast %18 : vector<1x32xi1> to vector<1x32xi1>
    %20 = arith.xori %16, %19 : vector<1x32xi1>
    %21 = arith.andi %20, %14 : vector<1x32xi1>
    %22 = vector.broadcast %10 : i32 to vector<1x32xi32>
    %23 = arith.addi %12, %22 : vector<1x32xi32>
    %24 = arith.select %21, %23, %12 : vector<1x32xi1>, vector<1x32xi32>
    %c1_i32_7 = arith.constant 1 : i32
    %25 = vector.broadcast %c1_i32_7 : i32 to vector<1x32xi32>
    %26 = arith.cmpi eq, %24, %25 : vector<1x32xi32>
    %27 = arith.cmpf oeq, %7, %7 : vector<2x32xf32>
    %28 = vector.broadcast %26 : vector<1x32xi1> to vector<2x32xi1>
    %29 = arith.andi %28, %27 : vector<2x32xi1>
    %cst = arith.constant 1.000000e+00 : f32
    %cst_8 = arith.constant 0.000000e+00 : f32
    %30 = vector.broadcast %cst : f32 to vector<2x32xf32>
    %31 = vector.broadcast %cst_8 : f32 to vector<2x32xf32>
    %32 = arith.select %29, %30, %31 : vector<2x32xi1>, vector<2x32xf32>
    %cst_9 = arith.constant dense<0.000000e+00> : vector<2xf32>
    %33 = vector.multi_reduction <add>, %32, %cst_9 [1] : vector<2x32xf32> to vector<2xf32>
    %34 = vector.shape_cast %33 : vector<2xf32> to vector<2x1xf32>
    %cst_10 = arith.constant 0.000000e+00 : f32
    %35 = vector.broadcast %cst_10 : f32 to vector<2x3xf32>
    %36 = vector.extract_strided_slice %6 {offsets = [0, 0], sizes = [2, 3], strides = [1, 1]} : vector<2x24xf32> to vector<2x3xf32>
    %37 = vector.extract_strided_slice %7 {offsets = [0, 5], sizes = [2, 3], strides = [1, 1]} : vector<2x32xf32> to vector<2x3xf32>
    %cst_11 = arith.constant 1.000000e+00 : f32
    %38 = vector.broadcast %cst_11 : f32 to vector<2x1xf32>
    %39 = arith.cmpf ogt, %34, %38 : vector<2x1xf32>
    %40 = arith.andi %5, %39 : vector<2x1xi1>
    %41 = arith.subf %36, %37 : vector<2x3xf32>
    %42 = arith.mulf %41, %41 : vector<2x3xf32>
    %cst_12 = arith.constant 0.000000e+00 : f32
    %43 = vector.shape_cast %40 : vector<2x1xi1> to vector<2x1xi1>
    %44 = vector.broadcast %43 : vector<2x1xi1> to vector<2x3xi1>
    %45 = vector.broadcast %cst_12 : f32 to vector<2x3xf32>
    %46 = arith.select %44, %42, %45 : vector<2x3xi1>, vector<2x3xf32>
    %47 = arith.addf %35, %46 : vector<2x3xf32>
    %48 = vector.extract_strided_slice %6 {offsets = [0, 3], sizes = [2, 3], strides = [1, 1]} : vector<2x24xf32> to vector<2x3xf32>
    %49 = vector.extract_strided_slice %7 {offsets = [0, 9], sizes = [2, 3], strides = [1, 1]} : vector<2x32xf32> to vector<2x3xf32>
    %cst_13 = arith.constant 2.000000e+00 : f32
    %50 = vector.broadcast %cst_13 : f32 to vector<2x1xf32>
    %51 = arith.cmpf ogt, %34, %50 : vector<2x1xf32>
    %52 = arith.andi %5, %51 : vector<2x1xi1>
    %53 = arith.subf %48, %49 : vector<2x3xf32>
    %54 = arith.mulf %53, %53 : vector<2x3xf32>
    %cst_14 = arith.constant 0.000000e+00 : f32
    %55 = vector.shape_cast %52 : vector<2x1xi1> to vector<2x1xi1>
    %56 = vector.broadcast %55 : vector<2x1xi1> to vector<2x3xi1>
    %57 = vector.broadcast %cst_14 : f32 to vector<2x3xf32>
    %58 = arith.select %56, %54, %57 : vector<2x3xi1>, vector<2x3xf32>
    %59 = arith.addf %47, %58 : vector<2x3xf32>
    %60 = vector.extract_strided_slice %6 {offsets = [0, 6], sizes = [2, 3], strides = [1, 1]} : vector<2x24xf32> to vector<2x3xf32>
    %61 = vector.extract_strided_slice %7 {offsets = [0, 13], sizes = [2, 3], strides = [1, 1]} : vector<2x32xf32> to vector<2x3xf32>
    %cst_15 = arith.constant 3.000000e+00 : f32
    %62 = vector.broadcast %cst_15 : f32 to vector<2x1xf32>
    %63 = arith.cmpf ogt, %34, %62 : vector<2x1xf32>
    %64 = arith.andi %5, %63 : vector<2x1xi1>
    %65 = arith.subf %60, %61 : vector<2x3xf32>
    %66 = arith.mulf %65, %65 : vector<2x3xf32>
    %cst_16 = arith.constant 0.000000e+00 : f32
    %67 = vector.shape_cast %64 : vector<2x1xi1> to vector<2x1xi1>
    %68 = vector.broadcast %67 : vector<2x1xi1> to vector<2x3xi1>
    %69 = vector.broadcast %cst_16 : f32 to vector<2x3xf32>
    %70 = arith.select %68, %66, %69 : vector<2x3xi1>, vector<2x3xf32>
    %71 = arith.addf %59, %70 : vector<2x3xf32>
    %72 = vector.extract_strided_slice %6 {offsets = [0, 9], sizes = [2, 3], strides = [1, 1]} : vector<2x24xf32> to vector<2x3xf32>
    %73 = vector.extract_strided_slice %7 {offsets = [0, 17], sizes = [2, 3], strides = [1, 1]} : vector<2x32xf32> to vector<2x3xf32>
    %cst_17 = arith.constant 4.000000e+00 : f32
    %74 = vector.broadcast %cst_17 : f32 to vector<2x1xf32>
    %75 = arith.cmpf ogt, %34, %74 : vector<2x1xf32>
    %76 = arith.andi %5, %75 : vector<2x1xi1>
    %77 = arith.subf %72, %73 : vector<2x3xf32>
    %78 = arith.mulf %77, %77 : vector<2x3xf32>
    %cst_18 = arith.constant 0.000000e+00 : f32
    %79 = vector.shape_cast %76 : vector<2x1xi1> to vector<2x1xi1>
    %80 = vector.broadcast %79 : vector<2x1xi1> to vector<2x3xi1>
    %81 = vector.broadcast %cst_18 : f32 to vector<2x3xf32>
    %82 = arith.select %80, %78, %81 : vector<2x3xi1>, vector<2x3xf32>
    %83 = arith.addf %71, %82 : vector<2x3xf32>
    %84 = vector.extract_strided_slice %6 {offsets = [0, 12], sizes = [2, 3], strides = [1, 1]} : vector<2x24xf32> to vector<2x3xf32>
    %85 = vector.extract_strided_slice %7 {offsets = [0, 21], sizes = [2, 3], strides = [1, 1]} : vector<2x32xf32> to vector<2x3xf32>
    %cst_19 = arith.constant 5.000000e+00 : f32
    %86 = vector.broadcast %cst_19 : f32 to vector<2x1xf32>
    %87 = arith.cmpf ogt, %34, %86 : vector<2x1xf32>
    %88 = arith.andi %5, %87 : vector<2x1xi1>
    %89 = arith.subf %84, %85 : vector<2x3xf32>
    %90 = arith.mulf %89, %89 : vector<2x3xf32>
    %cst_20 = arith.constant 0.000000e+00 : f32
    %91 = vector.shape_cast %88 : vector<2x1xi1> to vector<2x1xi1>
    %92 = vector.broadcast %91 : vector<2x1xi1> to vector<2x3xi1>
    %93 = vector.broadcast %cst_20 : f32 to vector<2x3xf32>
    %94 = arith.select %92, %90, %93 : vector<2x3xi1>, vector<2x3xf32>
    %95 = arith.addf %83, %94 : vector<2x3xf32>
    %96 = vector.extract_strided_slice %6 {offsets = [0, 15], sizes = [2, 3], strides = [1, 1]} : vector<2x24xf32> to vector<2x3xf32>
    %97 = vector.extract_strided_slice %7 {offsets = [0, 25], sizes = [2, 3], strides = [1, 1]} : vector<2x32xf32> to vector<2x3xf32>
    %cst_21 = arith.constant 6.000000e+00 : f32
    %98 = vector.broadcast %cst_21 : f32 to vector<2x1xf32>
    %99 = arith.cmpf ogt, %34, %98 : vector<2x1xf32>
    %100 = arith.andi %5, %99 : vector<2x1xi1>
    %101 = arith.subf %96, %97 : vector<2x3xf32>
    %102 = arith.mulf %101, %101 : vector<2x3xf32>
    %cst_22 = arith.constant 0.000000e+00 : f32
    %103 = vector.shape_cast %100 : vector<2x1xi1> to vector<2x1xi1>
    %104 = vector.broadcast %103 : vector<2x1xi1> to vector<2x3xi1>
    %105 = vector.broadcast %cst_22 : f32 to vector<2x3xf32>
    %106 = arith.select %104, %102, %105 : vector<2x3xi1>, vector<2x3xf32>
    %107 = arith.addf %95, %106 : vector<2x3xf32>
    %108 = vector.extract_strided_slice %6 {offsets = [0, 18], sizes = [2, 3], strides = [1, 1]} : vector<2x24xf32> to vector<2x3xf32>
    %109 = vector.extract_strided_slice %7 {offsets = [0, 29], sizes = [2, 3], strides = [1, 1]} : vector<2x32xf32> to vector<2x3xf32>
    %cst_23 = arith.constant 7.000000e+00 : f32
    %110 = vector.broadcast %cst_23 : f32 to vector<2x1xf32>
    %111 = arith.cmpf ogt, %34, %110 : vector<2x1xf32>
    %112 = arith.andi %5, %111 : vector<2x1xi1>
    %113 = arith.subf %108, %109 : vector<2x3xf32>
    %114 = arith.mulf %113, %113 : vector<2x3xf32>
    %cst_24 = arith.constant 0.000000e+00 : f32
    %115 = vector.shape_cast %112 : vector<2x1xi1> to vector<2x1xi1>
    %116 = vector.broadcast %115 : vector<2x1xi1> to vector<2x3xi1>
    %117 = vector.broadcast %cst_24 : f32 to vector<2x3xf32>
    %118 = arith.select %116, %114, %117 : vector<2x3xi1>, vector<2x3xf32>
    %119 = arith.addf %107, %118 : vector<2x3xf32>
    %120 = vector.shape_cast %119 : vector<2x3xf32> to vector<1x2x3xf32>
    %cst_25 = arith.constant dense<0.000000e+00> : vector<1xf32>
    %121 = vector.multi_reduction <add>, %120, %cst_25 [1, 2] : vector<1x2x3xf32> to vector<1xf32>
    %122 = vector.shape_cast %121 : vector<1xf32> to vector<1x1x1xf32>
    %123 = vector.extract %122[0, 0, 0] : f32 from vector<1x1x1xf32>
    %cst_26 = arith.constant 1.000000e+00 : f32
    %124 = vector.broadcast %cst_26 : f32 to vector<2x1xf32>
    %125 = arith.subf %34, %124 : vector<2x1xf32>
    %cst_27 = arith.constant 0.000000e+00 : f32
    %126 = vector.broadcast %cst_27 : f32 to vector<2x1xf32>
    %127 = arith.maximumf %125, %126 : vector<2x1xf32>
    %cst_28 = arith.constant 0.000000e+00 : f32
    %128 = vector.broadcast %cst_28 : f32 to vector<2x1xf32>
    %129 = arith.select %5, %127, %128 : vector<2x1xi1>, vector<2x1xf32>
    %130 = vector.shape_cast %129 : vector<2x1xf32> to vector<1x2x1xf32>
    %cst_29 = arith.constant dense<0.000000e+00> : vector<1xf32>
    %131 = vector.multi_reduction <add>, %130, %cst_29 [1, 2] : vector<1x2x1xf32> to vector<1xf32>
    %132 = vector.shape_cast %131 : vector<1xf32> to vector<1x1x1xf32>
    %133 = vector.extract %132[0, 0, 0] : f32 from vector<1x1x1xf32>
    %cst_30 = arith.constant 3.000000e+00 : f32
    %134 = arith.mulf %cst_30, %133 : f32
    %135 = tpu.iota {dimensions = array<i32: 1>} : vector<1x8x128xi32>
    %c0_i32_31 = arith.constant 0 : i32
    %136 = vector.broadcast %c0_i32_31 : i32 to vector<1x8x128xi32>
    %137 = arith.cmpi eq, %135, %136 : vector<1x8x128xi32>
    %c1_i32_32 = arith.constant 1 : i32
    %138 = vector.broadcast %c1_i32_32 : i32 to vector<1x8x128xi32>
    %139 = arith.cmpi eq, %135, %138 : vector<1x8x128xi32>
    %cst_33 = arith.constant 0.000000e+00 : f32
    %140 = vector.broadcast %134 : f32 to vector<1x8x128xf32>
    %141 = vector.broadcast %cst_33 : f32 to vector<1x8x128xf32>
    %142 = arith.select %139, %140, %141 : vector<1x8x128xi1>, vector<1x8x128xf32>
    %143 = vector.broadcast %123 : f32 to vector<1x8x128xf32>
    %144 = arith.select %137, %143, %142 : vector<1x8x128xi1>, vector<1x8x128xf32>
    %c0_34 = arith.constant 0 : index
    %c0_35 = arith.constant 0 : index
    %c0_36 = arith.constant 0 : index
    %145 = vector.load %arg3[%c0_34, %c0_35, %c0_36] : memref<1x8x128xf32, #tpu.memory_space<vmem>>, vector<1x8x128xf32>
    tpu.vector_store %arg3[%c0_34, %c0_35, %c0_36], %144 {strides = array<i32>} : memref<1x8x128xf32, #tpu.memory_space<vmem>>, vector<1x8x128xf32>,
    return
  }
  func.func @transform_0(%arg0: i32) -> (i32, i32) {
    %c0_i32 = arith.constant 0 : i32
    %c0_i32_0 = arith.constant 0 : i32
    return %arg0, %c0_i32 : i32, i32
  }
  func.func @transform_1(%arg0: i32) -> (i32, i32) {
    %c0_i32 = arith.constant 0 : i32
    %c0_i32_0 = arith.constant 0 : i32
    return %arg0, %c0_i32 : i32, i32
  }
  func.func @transform_2(%arg0: i32) -> (i32, i32, i32) {
    %c0_i32 = arith.constant 0 : i32
    %c0_i32_0 = arith.constant 0 : i32
    %c0_i32_1 = arith.constant 0 : i32
    return %arg0, %c0_i32, %c0_i32_0 : i32, i32, i32
  }
}

</mosaic_0001>

<llo_original>
// kernel: tpu_custom_call.1
$region0: #{tpu_custom_call.1}
  #allocation0 [shape = 'u32[]', space=smem, size = 0x4, offset = 0x4, fixed_abs, tag = 'smem constant byte address 0x4 - core index']
  #allocation1 [shape = 'u32[72,128]{1,0:T(1,128)}', space=vmem, size = 0x9000, scoped, tag = 'internal scratch']
  %s0 = inlined_call_operand.hbm [shape: f32[2,24], index: 0, kind: input, shape index: {}]
  %s1 = inlined_call_operand.hbm [shape: f32[2,32], index: 1, kind: input, shape index: {}]
  %s2 = inlined_call_operand.hbm [shape: f32[1,8,128], index: 2, kind: output, shape index: {}]
  %s3 = sld [smem:[#allocation0]]
  $region26: #{tpu_custom_call.1} parent=0
    _
  %s5 = ssub.s32 1, %s3
  %s6 = scalar_select 0, %s5, %s3
  $region1: #{tpu_custom_call.1} parent=0
    #allocation2 [shape = 'u8[1024]{0}', space=vmem, size = 0x400, scoped, tag = 'input window, operand 0, single buffered']
    #allocation3 [shape = 's32[1]{0}', space=sflag, size = 0x4, scoped, tag = 'scoped memory for tpu_custom_call.1']
    #allocation4 [shape = 's32[1]{0}', space=sflag, size = 0x4, scoped, tag = 'scoped memory for tpu_custom_call.1']
    #allocation5 [shape = 'u8[1024]{0}', space=vmem, size = 0x400, scoped, tag = 'input window, operand 1, single buffered']
    #allocation6 [shape = 's32[1]{0}', space=sflag, size = 0x4, scoped, tag = 'scoped memory for tpu_custom_call.1']
    #allocation7 [shape = 'u8[4096]{0}', space=vmem, size = 0x1000, scoped, tag = 'output window, operand 0, single buffered']
    %7 = vsyncpa [#allocation3], 0
    %8 = vsyncpa [#allocation6], 0
    %9 = vsyncpa [#allocation4], 0
    // Predicated region
    $region2: #{tpu_custom_call.1} parent=1 // pred_check
      _
    $region3: #{tpu_custom_call.1} parent=1 // pred_check_branch
      %11 = sbr.rel (0) target = $region5
    $region4: #{tpu_custom_call.1} parent=1 // pred_region
      %13 = vsyncadd [#allocation3], 0
      %s15 = sshll.u32 %s0, 4
      %s16 = int_to_ptr.hbm [resolvable:$true] %s15
      %s17 = sshll.u32 [#allocation2], 4
      %s18 = int_to_ptr.vmem [resolvable:$true] %s17
      %20 = dma.hbm_to_vmem [thread:$0]  %s16, 32, %s18, [#allocation3]
    $region5: #{tpu_custom_call.1} parent=1 // pred_fallthru
      _
    // Predicated region
    $region6: #{tpu_custom_call.1} parent=1 // pred_check
      _
    $region7: #{tpu_custom_call.1} parent=1 // pred_check_branch
      %22 = sbr.rel (0) target = $region9
    $region8: #{tpu_custom_call.1} parent=1 // pred_region
      %24 = vsyncadd [#allocation6], 0
      %s26 = sshll.u32 %s1, 4
      %s27 = int_to_ptr.hbm [resolvable:$true] %s26
      %s28 = sshll.u32 [#allocation5], 4
      %s29 = int_to_ptr.vmem [resolvable:$true] %s28
      %31 = dma.hbm_to_vmem [thread:$0]  %s27, 32, %s29, [#allocation6]
    $region9: #{tpu_custom_call.1} parent=1 // pred_fallthru
      _
    // Predicated region
    $region10: #{tpu_custom_call.1} parent=1 // pred_check
      _
    $region11: #{tpu_custom_call.1} parent=1 // pred_check_branch
      %33 = sbr.rel (0) target = $region13
    $region12: #{tpu_custom_call.1} parent=1 // pred_region
      %35 = dma.done [#allocation3], 32
    $region13: #{tpu_custom_call.1} parent=1 // pred_fallthru
      _
    // Predicated region
    $region14: #{tpu_custom_call.1} parent=1 // pred_check
      _
    $region15: #{tpu_custom_call.1} parent=1 // pred_check_branch
      %37 = sbr.rel (0) target = $region17
    $region16: #{tpu_custom_call.1} parent=1 // pred_region
      %39 = dma.done [#allocation6], 32
    $region17: #{tpu_custom_call.1} parent=1 // pred_fallthru
      _
    %v40 = vlaneseq
    %v41 = vshrl.u32 %v40, 7
    %s42 = smul.u32 0, 2
    %v43 = vstv %s42
    %v44 = vadd.s32 %v41, %v43
    %vm45 = vcmp.lt.s32.totalorder %v44, 2
    %v46 = vld [vmem:[#allocation2] sm:$0x3]
    %v47 = vld [vmem:[#allocation5] sm:$0x3]
    %v48 = vlaneseq
    %v49 = vand.u32 %v48, 127
    %vm50 = vcmp.lt.s32.totalorder %v49, 0
    %v51 = vsub.s32 0, %v49
    %v52 = vsel %vm50, %v51, %v49
    %v53 = vshrl.u32 %v52, 2
    %v54 = vand.u32 %v52, 3
    %v55 = vsub.s32 0, %v54
    %v56 = vsel %vm50, %v55, %v54
    %vm57 = vcmp.ne.s32.totalorder %v56, 0
    %vm58 = vcmp.lt.s32.totalorder %v56, 0
    %vm59 = vmand %vm58, %vm57
    %v60 = vadd.s32 %v56, 4
    %v61 = vsel %vm59, %v60, %v56
    %vm62 = vcmp.eq.s32.totalorder %v61, 1
    %vm63 = vcmp.eq.f32.partialorder %v47, %v47
    %v64 = vsel %vm62, 1, 0
    %vm65 = vcmp.eq.s32.totalorder %v64, 1
    %vm66 = vmand %vm65, %vm63
    %v67 = vsel %vm66, 1.0, 0.0
    %vm68 = vcmask 254976
    %v69 = vsel %vm68, %v67, 0.0
    %70 = vadd.xlane.f32.xlu0 %v69
    %v71 = vpop.xlane.xlu0 %70
    %vm72 = vcmp.gt.f32.partialorder %v71, 1.0
    %vm73 = vmand %vm45, %vm72
    %75 = vrot.lane.b32.xlu0 %v47, 123
    %v76 = vpop.permute.xlu0 %75
    %v78 = vsub.f32 %v46, %v76
    %v79 = vmul.f32 %v78, %v78
    %v80 = vsel %vm73, 1, 0
    %vm81 = vcmp.eq.s32.totalorder %v80, 1
    %v82 = vsel %vm81, %v79, 0.0
    %v83 = vadd.f32 %v82, 0.0
    %vm84 = vcmp.gt.f32.partialorder %v71, 2.0
    %vm85 = vmand %vm45, %vm84
    %86 = vrot.lane.b32.xlu0 %v47, 122
    %v87 = vpop.permute.xlu0 %86
    %v89 = vsub.f32 %v46, %v87
    %v90 = vmul.f32 %v89, %v89
    %v91 = vsel %vm85, 1, 0
    %vm92 = vcmp.eq.s32.totalorder %v91, 1
    %v93 = vsel %vm92, %v90, 0.0
    %95 = vrot.lane.b32.xlu0 %v93, 125
    %v96 = vpop.permute.xlu0 %95
    %v98 = vadd.f32 %v83, %v96
    %vm99 = vcmp.gt.f32.partialorder %v71, 3.0
    %vm100 = vmand %vm45, %vm99
    %101 = vrot.lane.b32.xlu0 %v47, 121
    %v102 = vpop.permute.xlu0 %101
    %v104 = vsub.f32 %v46, %v102
    %v105 = vmul.f32 %v104, %v104
    %v106 = vsel %vm100, 1, 0
    %vm107 = vcmp.eq.s32.totalorder %v106, 1
    %v108 = vsel %vm107, %v105, 0.0
    %110 = vrot.lane.b32.xlu0 %v108, 122
    %v111 = vpop.permute.xlu0 %110
    %v113 = vadd.f32 %v98, %v111
    %vm114 = vcmp.gt.f32.partialorder %v71, 4.0
    %vm115 = vmand %vm45, %vm114
    %116 = vrot.lane.b32.xlu0 %v47, 120
    %v117 = vpop.permute.xlu0 %116
    %v119 = vsub.f32 %v46, %v117
    %v120 = vmul.f32 %v119, %v119
    %v121 = vsel %vm115, 1, 0
    %vm122 = vcmp.eq.s32.totalorder %v121, 1
    %v123 = vsel %vm122, %v120, 0.0
    %125 = vrot.lane.b32.xlu0 %v123, 119
    %v126 = vpop.permute.xlu0 %125
    %v128 = vadd.f32 %v113, %v126
    %vm129 = vcmp.gt.f32.partialorder %v71, 5.0
    %vm130 = vmand %vm45, %vm129
    %131 = vrot.lane.b32.xlu0 %v47, 119
    %v132 = vpop.permute.xlu0 %131
    %v134 = vsub.f32 %v46, %v132
    %v135 = vmul.f32 %v134, %v134
    %v136 = vsel %vm130, 1, 0
    %vm137 = vcmp.eq.s32.totalorder %v136, 1
    %v138 = vsel %vm137, %v135, 0.0
    %140 = vrot.lane.b32.xlu0 %v138, 116
    %v141 = vpop.permute.xlu0 %140
    %v143 = vadd.f32 %v128, %v141
    %vm144 = vcmp.gt.f32.partialorder %v71, 6.0
    %vm145 = vmand %vm45, %vm144
    %146 = vrot.lane.b32.xlu0 %v47, 118
    %v147 = vpop.permute.xlu0 %146
    %v149 = vsub.f32 %v46, %v147
    %v150 = vmul.f32 %v149, %v149
    %v151 = vsel %vm145, 1, 0
    %vm152 = vcmp.eq.s32.totalorder %v151, 1
    %v153 = vsel %vm152, %v150, 0.0
    %155 = vrot.lane.b32.xlu0 %v153, 113
    %v156 = vpop.permute.xlu0 %155
    %v158 = vadd.f32 %v143, %v156
    %vm159 = vcmp.gt.f32.partialorder %v71, 7.0
    %vm160 = vmand %vm45, %vm159
    %161 = vrot.lane.b32.xlu0 %v47, 117
    %v162 = vpop.permute.xlu0 %161
    %v164 = vsub.f32 %v46, %v162
    %v165 = vmul.f32 %v164, %v164
    %v166 = vsel %vm160, 1, 0
    %vm167 = vcmp.eq.s32.totalorder %v166, 1
    %v168 = vsel %vm167, %v165, 0.0
    %170 = vrot.lane.b32.xlu0 %v168, 110
    %v171 = vpop.permute.xlu0 %170
    %v173 = vadd.f32 %v158, %v171
    %vm174 = vcmask 17408
    %v175 = vsel %vm174, %v173, 0.0
    %176 = vadd.xlane.f32.xlu0 %v175
    %v177 = vpop.xlane.xlu0 %176
    %v178 = vrot.slane %v177, 4
    %v179 = vadd.f32 %v177, %v178
    %v180 = vrot.slane %v179, 2
    %v181 = vadd.f32 %v179, %v180
    %v182 = vrot.slane %v181, 1
    %v183 = vadd.f32 %v181, %v182
    %s184 = vtos %v183
    %v185 = vsub.f32 %v71, 1.0
    %v186 = vmax.f32 %v185, 0.0
    %v187 = vsel %vm45, %v186, 0.0
    %vm188 = vcmask 1024
    %v189 = vsel %vm188, %v187, 0.0
    %190 = vadd.xlane.f32.xlu0 %v189
    %v191 = vpop.xlane.xlu0 %190
    %v192 = vrot.slane %v191, 4
    %v193 = vadd.f32 %v191, %v192
    %v194 = vrot.slane %v193, 2
    %v195 = vadd.f32 %v193, %v194
    %v196 = vrot.slane %v195, 1
    %v197 = vadd.f32 %v195, %v196
    %s198 = vtos %v197
    %s199 = smul.f32 %s198, 3.0
    %vm200 = vcmp.eq.s32.totalorder %v41, 0
    %vm201 = vcmp.eq.s32.totalorder %v41, 1
    %v202 = vstv %s199
    %v203 = vsel %vm201, %v202, 0.0
    %v204 = vstv %s184
    %v205 = vsel %vm200, %v204, %v203
    %206 = vst [vmem:[#allocation7] sm:$0xff] %v205
    // Predicated region
    $region18: #{tpu_custom_call.1} parent=1 // pred_check
      _
    $region19: #{tpu_custom_call.1} parent=1 // pred_check_branch
      %208 = sbr.rel (0) target = $region21
    $region20: #{tpu_custom_call.1} parent=1 // pred_region
      %210 = vsyncadd [#allocation4], 0
      %s212 = sshll.u32 [#allocation7], 4
      %s213 = int_to_ptr.vmem [resolvable:$true] %s212
      %s214 = sshll.u32 %s2, 4
      %s215 = int_to_ptr.hbm [resolvable:$true] %s214
      %217 = dma.vmem_to_hbm [thread:$0]  %s213, 128, %s215, [#allocation4]
    $region21: #{tpu_custom_call.1} parent=1 // pred_fallthru
      _
    // Predicated region
    $region22: #{tpu_custom_call.1} parent=1 // pred_check
      _
    $region23: #{tpu_custom_call.1} parent=1 // pred_check_branch
      %219 = sbr.rel (0) target = $region25
    $region24: #{tpu_custom_call.1} parent=1 // pred_region
      %221 = dma.done [#allocation4], 128
    $region25: #{tpu_custom_call.1} parent=1 // pred_fallthru
      _
    %222 = vsyncpa [#allocation3], 1
    %223 = vsyncpa [#allocation6], 1
    %224 = vsyncpa [#allocation4], 1

</llo_original>
